<compile_context>
chip_gen: v7x
topology: tpu7x:2x2x1
jax: 0.10.0
libtpu: 0.0.40
codegen_flags: <defaults>
</compile_context>

<pallas_src>
import jax
import jax.numpy as jnp
from jax.experimental import pallas as pl
from jax.experimental.pallas import tpu as pltpu


def _identity_kernel(x_ref, o_ref):
    # Straight VMEM tile copy (identity forward).
    o_ref[...] = x_ref[...]


_TARGET_TILE_BYTES = 2 * 1024 * 1024  # ~2 MiB/tile -> 2 bufs x 2 arrays = 8 MiB VMEM


def _round_down_mult(v, m):
    return max(m, (v // m) * m)


def _pallas_copy(x, block_shape, grid, index_map):
    return pl.pallas_call(
        _identity_kernel,
        out_shape=jax.ShapeDtypeStruct(x.shape, x.dtype),
        grid_spec=pltpu.PrefetchScalarGridSpec(
            num_scalar_prefetch=0,
            grid=(grid,),
            in_specs=[pl.BlockSpec(block_shape, index_map)],
            out_specs=pl.BlockSpec(block_shape, index_map),
        ),
        compiler_params=pltpu.CompilerParams(
            dimension_semantics=("parallel",)
        ),
    )(x)


def _copy_lane_dense(x2d):
    """Copy a (rows, W) lane-dense 2D view; W is a multiple of 128."""
    rows, w = x2d.shape
    itemsize = jnp.dtype(x2d.dtype).itemsize
    bytes_per_row = w * itemsize

    if rows <= 8:
        # Block second-to-last dim equals the full dim -> always legal.
        tile_rows = rows
    else:
        tile_rows = max(8, _TARGET_TILE_BYTES // bytes_per_row)
        tile_rows = min(rows, tile_rows)
        tile_rows = _round_down_mult(tile_rows, 8)
        # Prefer >= 2 grid blocks so v7x's two TensorCores share the copy.
        if tile_rows >= rows and rows >= 16:
            half = -(-rows // 2)              # ceil(rows / 2)
            half = -(-half // 8) * 8          # round up to sublane multiple
            tile_rows = min(half, _round_down_mult(rows, 8))

    grid = pl.cdiv(rows, tile_rows)
    return _pallas_copy(x2d, (tile_rows, w), grid, lambda i: (i, 0))


def _copy_nd(x):
    """Fallback: copy in the original shape, tiling only the leading dim.

    Trailing block dims equal the full array dims, which satisfies the
    (8, 128) rule without any padding.
    """
    shape = x.shape
    ndim = x.ndim

    if ndim == 1:
        x2 = x.reshape(1, shape[0])
        out = _pallas_copy(x2, (1, shape[0]), 1, lambda i: (0, 0))
        return out.reshape(shape)

    lead = shape[0]
    inner = 1
    for d in shape[1:]:
        inner *= d
    itemsize = jnp.dtype(x.dtype).itemsize
    tb = max(1, min(lead, _TARGET_TILE_BYTES // max(1, inner * itemsize)))

    if ndim == 2 and tb < lead:
        # Second-to-last block dim must be a multiple of 8 (or equal lead).
        tb = _round_down_mult(tb, 8) if tb >= 8 else min(8, lead)
        if tb > lead:
            tb = lead

    grid = pl.cdiv(lead, tb)
    block = (tb,) + shape[1:]
    index_map = lambda i: (i,) + (0,) * (ndim - 1)
    return _pallas_copy(x, block, grid, index_map)


def empty_forward(x):
    """Identity forward pass of `EMPTY`, computed through a Pallas TPU kernel."""
    if x.size == 0:
        return x
    if x.ndim == 0:
        return _copy_nd(x.reshape(1)).reshape(())

    n = x.size
    # Prefer a wide, lane-dense 2D view (reshape is free for contiguous arrays).
    for w in (2048, 1024, 512, 256, 128):
        if n % w == 0:
            rows = n // w
            out2d = _copy_lane_dense(x.reshape(rows, w))
            return out2d.reshape(x.shape)

    # Element count not divisible by 128: copy in the original shape.
    return _copy_nd(x)


if __name__ == "__main__":
    key = jax.random.PRNGKey(0)
    # Small NCHW input consistent with a VGG-style module: (batch=2, C=4, H=16, W=16)
    x = jax.random.normal(key, (2, 4, 16, 16), dtype=jnp.float32)

    y = empty_forward(x)
    jax.block_until_ready(y)

    assert y.shape == x.shape and y.dtype == x.dtype
    assert jnp.array_equal(y, x)
    print("KERNEL_OK")
</pallas_src>

<mosaic_0001>
module attributes {stable_mosaic.version = 11 : i64} {
  func.func @_identity_kernel(%arg0: i32, %arg1: memref<1x2048xf32, #tpu.memory_space<vmem>>, %arg2: memref<1x2048xf32, #tpu.memory_space<vmem>>) attributes {dimension_semantics = [#tpu.dimension_semantics<parallel>], iteration_bounds = array<i64: 1>, scalar_prefetch = 0 : i64, scratch_operands = 0 : i64, tpu.core_type = #tpu.core_type<tc>, window_params = [{transform_indices = @transform_0, window_bounds = array<i64: 1, 2048>}, {transform_indices = @transform_1, window_bounds = array<i64: 1, 2048>}]} {
    %c0 = arith.constant 0 : index
    %c0_0 = arith.constant 0 : index
    %0 = vector.load %arg1[%c0, %c0_0] : memref<1x2048xf32, #tpu.memory_space<vmem>>, vector<1x2048xf32>
    %c0_1 = arith.constant 0 : index
    %c0_2 = arith.constant 0 : index
    %1 = vector.load %arg2[%c0_1, %c0_2] : memref<1x2048xf32, #tpu.memory_space<vmem>>, vector<1x2048xf32>
    tpu.vector_store %arg2[%c0_1, %c0_2], %0 {strides = array<i32>} : memref<1x2048xf32, #tpu.memory_space<vmem>>, vector<1x2048xf32>,
    return
  }
  func.func @transform_0(%arg0: i32) -> (i32, i32) {
    %c0_i32 = arith.constant 0 : i32
    %c0_i32_0 = arith.constant 0 : i32
    return %arg0, %c0_i32 : i32, i32
  }
  func.func @transform_1(%arg0: i32) -> (i32, i32) {
    %c0_i32 = arith.constant 0 : i32
    %c0_i32_0 = arith.constant 0 : i32
    return %arg0, %c0_i32 : i32, i32
  }
}

</mosaic_0001>

<llo_original>
// kernel: tpu_custom_call.1
$region0: #{tpu_custom_call.1}
  #allocation0 [shape = 'u32[]', space=smem, size = 0x4, offset = 0x4, fixed_abs, tag = 'smem constant byte address 0x4 - core index']
  #allocation1 [shape = 'u32[144,128]{1,0:T(1,128)}', space=vmem, size = 0x12000, scoped, tag = 'internal scratch']
  %s0 = inlined_call_operand.hbm [shape: f32[1,2048], index: 0, kind: input, shape index: {}]
  %s1 = inlined_call_operand.hbm [shape: f32[1,2048], index: 1, kind: output, shape index: {}]
  %s2 = sld [smem:[#allocation0]]
  $region18: #{tpu_custom_call.1} parent=0
    _
  %s4 = ssub.s32 1, %s2
  %s5 = scalar_select 0, %s4, %s2
  $region1: #{tpu_custom_call.1} parent=0
    #allocation2 [shape = 'u8[8192]{0}', space=vmem, size = 0x2000, scoped, tag = 'input window, operand 0, single buffered']
    #allocation3 [shape = 's32[1]{0}', space=sflag, size = 0x4, scoped, tag = 'scoped memory for tpu_custom_call.1']
    #allocation4 [shape = 's32[1]{0}', space=sflag, size = 0x4, scoped, tag = 'scoped memory for tpu_custom_call.1']
    #allocation5 [shape = 'u8[8192]{0}', space=vmem, size = 0x2000, scoped, tag = 'output window, operand 0, single buffered']
    %6 = vsyncpa [#allocation3], 0
    %7 = vsyncpa [#allocation4], 0
    // Predicated region
    $region2: #{tpu_custom_call.1} parent=1 // pred_check
      _
    $region3: #{tpu_custom_call.1} parent=1 // pred_check_branch
      %9 = sbr.rel (0) target = $region5
    $region4: #{tpu_custom_call.1} parent=1 // pred_region
      %s11 = ssub.s32 256, 256
      %12 = vsyncadd [#allocation3], %s11
      %s14 = sshll.u32 [#allocation2], 4
      %s15 = int_to_ptr.vmem [resolvable:$true] %s14
      %17 = dma.hbm_to_vmem [thread:$0]  %s0, 256, %s15, [#allocation3]
    $region5: #{tpu_custom_call.1} parent=1 // pred_fallthru
      _
    // Predicated region
    $region6: #{tpu_custom_call.1} parent=1 // pred_check
      _
    $region7: #{tpu_custom_call.1} parent=1 // pred_check_branch
      %19 = sbr.rel (0) target = $region9
    $region8: #{tpu_custom_call.1} parent=1 // pred_region
      %20 = dma.done [#allocation3], 256
    $region9: #{tpu_custom_call.1} parent=1 // pred_fallthru
      _
    %v21 = vld [vmem:[#allocation2] sm:$0xff]
    %v22 = vld [vmem:[#allocation2 + $0x8] sm:$0xff]
    %23 = vst [vmem:[#allocation5] sm:$0xff] %v21
    %24 = vst [vmem:[#allocation5 + $0x8] sm:$0xff] %v22
    // Predicated region
    $region10: #{tpu_custom_call.1} parent=1 // pred_check
      _
    $region11: #{tpu_custom_call.1} parent=1 // pred_check_branch
      %26 = sbr.rel (0) target = $region13
    $region12: #{tpu_custom_call.1} parent=1 // pred_region
      %s28 = ssub.s32 256, 256
      %29 = vsyncadd [#allocation4], %s28
      %s31 = sshll.u32 [#allocation5], 4
      %s32 = int_to_ptr.vmem [resolvable:$true] %s31
      %34 = dma.vmem_to_hbm [thread:$0]  %s32, 256, %s1, [#allocation4]
    $region13: #{tpu_custom_call.1} parent=1 // pred_fallthru
      _
    // Predicated region
    $region14: #{tpu_custom_call.1} parent=1 // pred_check
      _
    $region15: #{tpu_custom_call.1} parent=1 // pred_check_branch
      %36 = sbr.rel (0) target = $region17
    $region16: #{tpu_custom_call.1} parent=1 // pred_region
      %37 = dma.done [#allocation4], 256
    $region17: #{tpu_custom_call.1} parent=1 // pred_fallthru
      _
    %38 = vsyncpa [#allocation3], 1
    %39 = vsyncpa [#allocation4], 1

</llo_original>
